<compile_context>
chip_gen: v6e
topology: v6e:2x2x1
jax: 0.10.0
libtpu: 0.0.40
codegen_flags: <defaults>
</compile_context>

<pallas_src>
import jax
import jax.numpy as jnp
from jax.experimental import pallas as pl
from jax.experimental.pallas import tpu as pltpu


def _round_up(x, m):
    return ((x + m - 1) // m) * m


def _mlp_kernel(xt_ref, w1t_ref, b1_ref, w2_ref, o_ref):
    # xt_ref : (D_in, TB)  bf16   -- activation tile, batch on lanes
    # w1t_ref: (H, D_in)   bf16   -- resident first-layer weights (transposed)
    # b1_ref : (H, 1)      f32    -- resident first-layer bias (column)
    # w2_ref : (H, 1)      f32    -- resident second-layer weights (column)
    # o_ref  : (1, TB)     f32    -- lane-dense logits tile
    h = jnp.dot(w1t_ref[...], xt_ref[...],
                preferred_element_type=jnp.float32)          # (H, TB), f32 acc on MXU
    h = jnp.maximum(h + b1_ref[...], 0.0)                    # bias (lane-bcast) + ReLU
    # Final Linear(H, 1): sublane reduction -> directly lane-dense (1, TB) output.
    o_ref[...] = jnp.sum(h * w2_ref[...], axis=0, keepdims=True)


def binary_classifier_forward(x, w1, b1, w2, b2):
    """x: (B, D_in) f32; w1: (D_in, H); b1: (H,); w2: (H, 1); b2: (1,).
    Returns logits of shape (B,) like torch .squeeze(-1)."""
    B, D_in = x.shape
    H = w1.shape[1]

    # Lane-dense batch tiling: round batch up to a multiple of 128, then pick the
    # largest tile in {512, 256, 128} that divides it (512-row tiles hit ~85% of
    # the HBM roofline in the reference sweep; no extra padding waste).
    B_pad = _round_up(B, 128)
    TB = next(t for t in (512, 256, 128) if B_pad % t == 0)
    num_tiles = B_pad // TB

    # Wrapper-side layout plumbing: batch -> lane axis, bf16 matmul inputs.
    xt = jnp.pad(x, ((0, B_pad - B), (0, 0))).T.astype(jnp.bfloat16)   # (D_in, B_pad)
    w1t = w1.T.astype(jnp.bfloat16)                                    # (H, D_in)
    b1c = b1.reshape(H, 1).astype(jnp.float32)                         # (H, 1)
    w2c = w2.reshape(H, 1).astype(jnp.float32)                         # (H, 1)

    out = pl.pallas_call(
        _mlp_kernel,
        out_shape=jax.ShapeDtypeStruct((1, B_pad), jnp.float32),
        grid=(num_tiles,),
        in_specs=[
            pl.BlockSpec((D_in, TB), lambda i: (0, i)),   # streamed activations
            pl.BlockSpec((H, D_in), lambda i: (0, 0)),    # resident weights
            pl.BlockSpec((H, 1), lambda i: (0, 0)),       # resident bias
            pl.BlockSpec((H, 1), lambda i: (0, 0)),       # resident 2nd-layer weights
        ],
        out_specs=pl.BlockSpec((1, TB), lambda i: (0, i)),
        compiler_params=pltpu.CompilerParams(
            dimension_semantics=("parallel",)),
    )(xt, w1t, b1c, w2c)

    # Scalar output bias folded outside the kernel; drop padded batch rows.
    return out[0, :B] + b2[0]


def init_params(key, input_dim, hidden_dim):
    # Deterministic init mimicking nn.Linear's U(-1/sqrt(fan_in), 1/sqrt(fan_in)).
    k1, k2, k3, k4 = jax.random.split(key, 4)
    lim1 = 1.0 / jnp.sqrt(jnp.float32(input_dim))
    lim2 = 1.0 / jnp.sqrt(jnp.float32(hidden_dim))
    w1 = jax.random.uniform(k1, (input_dim, hidden_dim), jnp.float32, -lim1, lim1)
    b1 = jax.random.uniform(k2, (hidden_dim,), jnp.float32, -lim1, lim1)
    w2 = jax.random.uniform(k3, (hidden_dim, 1), jnp.float32, -lim2, lim2)
    b2 = jax.random.uniform(k4, (1,), jnp.float32, -lim2, lim2)
    return w1, b1, w2, b2


if __name__ == "__main__":
    key = jax.random.PRNGKey(0)
    kx, kp = jax.random.split(key)

    batch, input_dim, hidden_dim = 8, 16, 32
    x = jax.random.normal(kx, (batch, input_dim), jnp.float32)
    w1, b1, w2, b2 = init_params(kp, input_dim, hidden_dim)

    logits = binary_classifier_forward(x, w1, b1, w2, b2)
    jax.block_until_ready(logits)
    assert logits.shape == (batch,)

    # Reference with matched bf16 first-layer matmul (f32 accumulation).
    h_ref = jnp.maximum(
        jnp.dot(x.astype(jnp.bfloat16), w1.astype(jnp.bfloat16),
                preferred_element_type=jnp.float32) + b1, 0.0)
    ref = (h_ref @ w2 + b2)[:, 0]
    assert jnp.allclose(logits, ref, atol=1e-3, rtol=1e-3)

    # Loose sanity check against the full-f32 PyTorch-equivalent forward.
    ref32 = (jnp.maximum(x @ w1 + b1, 0.0) @ w2 + b2)[:, 0]
    assert jnp.allclose(logits, ref32, atol=5e-2, rtol=5e-2)

    print("KERNEL_OK")
</pallas_src>

<mosaic_0001>
module attributes {stable_mosaic.version = 11 : i64} {
  func.func @_mlp_kernel(%arg0: i32, %arg1: memref<16x128xbf16, #tpu.memory_space<vmem>>, %arg2: memref<32x16xbf16, #tpu.memory_space<vmem>>, %arg3: memref<32x1xf32, #tpu.memory_space<vmem>>, %arg4: memref<32x1xf32, #tpu.memory_space<vmem>>, %arg5: memref<1x128xf32, #tpu.memory_space<vmem>>) attributes {dimension_semantics = [#tpu.dimension_semantics<parallel>], iteration_bounds = array<i64: 1>, scalar_prefetch = 0 : i64, scratch_operands = 0 : i64, tpu.core_type = #tpu.core_type<tc>, window_params = [{transform_indices = @transform_0, window_bounds = array<i64: 16, 128>}, {pipeline_mode = #tpu.pipeline_mode<synchronous>, transform_indices = @transform_1, window_bounds = array<i64: 32, 16>}, {pipeline_mode = #tpu.pipeline_mode<synchronous>, transform_indices = @transform_2, window_bounds = array<i64: 32, 1>}, {pipeline_mode = #tpu.pipeline_mode<synchronous>, transform_indices = @transform_3, window_bounds = array<i64: 32, 1>}, {transform_indices = @transform_4, window_bounds = array<i64: 1, 128>}]} {
    %c0 = arith.constant 0 : index
    %c0_0 = arith.constant 0 : index
    %0 = vector.load %arg2[%c0, %c0_0] : memref<32x16xbf16, #tpu.memory_space<vmem>>, vector<32x16xbf16>
    %c0_1 = arith.constant 0 : index
    %c0_2 = arith.constant 0 : index
    %1 = vector.load %arg1[%c0_1, %c0_2] : memref<16x128xbf16, #tpu.memory_space<vmem>>, vector<16x128xbf16>
    %cst = arith.constant dense<0.000000e+00> : vector<32x128xf32>
    %2 = tpu.matmul %0, %1, %cst {dimension_numbers = #tpu.dot_dimension_numbers<[1], [0], [0], [1], [0, 0, 1, 1], [], []>} : vector<32x16xbf16>, vector<16x128xbf16>, vector<32x128xf32> -> vector<32x128xf32>
    %c0_3 = arith.constant 0 : index
    %c0_4 = arith.constant 0 : index
    %3 = vector.load %arg3[%c0_3, %c0_4] : memref<32x1xf32, #tpu.memory_space<vmem>>, vector<32x1xf32>
    %4 = vector.broadcast %3 : vector<32x1xf32> to vector<32x128xf32>
    %5 = arith.addf %2, %4 : vector<32x128xf32>
    %cst_5 = arith.constant 0.000000e+00 : f32
    %6 = vector.broadcast %cst_5 : f32 to vector<32x128xf32>
    %7 = arith.maximumf %5, %6 : vector<32x128xf32>
    %c0_6 = arith.constant 0 : index
    %c0_7 = arith.constant 0 : index
    %8 = vector.load %arg4[%c0_6, %c0_7] : memref<32x1xf32, #tpu.memory_space<vmem>>, vector<32x1xf32>
    %9 = vector.broadcast %8 : vector<32x1xf32> to vector<32x128xf32>
    %10 = arith.mulf %7, %9 : vector<32x128xf32>
    %cst_8 = arith.constant dense<0.000000e+00> : vector<128xf32>
    %11 = vector.multi_reduction <add>, %10, %cst_8 [0] : vector<32x128xf32> to vector<128xf32>
    %12 = vector.shape_cast %11 : vector<128xf32> to vector<1x128xf32>
    %c0_9 = arith.constant 0 : index
    %c0_10 = arith.constant 0 : index
    %13 = vector.load %arg5[%c0_9, %c0_10] : memref<1x128xf32, #tpu.memory_space<vmem>>, vector<1x128xf32>
    tpu.vector_store %arg5[%c0_9, %c0_10], %12 {strides = array<i32>} : memref<1x128xf32, #tpu.memory_space<vmem>>, vector<1x128xf32>,
    return
  }
  func.func @transform_0(%arg0: i32) -> (i32, i32) {
    %c0_i32 = arith.constant 0 : i32
    %c0_i32_0 = arith.constant 0 : i32
    return %c0_i32, %arg0 : i32, i32
  }
  func.func @transform_1(%arg0: i32) -> (i32, i32) {
    %c0_i32 = arith.constant 0 : i32
    %c0_i32_0 = arith.constant 0 : i32
    %c0_i32_1 = arith.constant 0 : i32
    return %c0_i32, %c0_i32_0 : i32, i32
  }
  func.func @transform_2(%arg0: i32) -> (i32, i32) {
    %c0_i32 = arith.constant 0 : i32
    %c0_i32_0 = arith.constant 0 : i32
    %c0_i32_1 = arith.constant 0 : i32
    return %c0_i32, %c0_i32_0 : i32, i32
  }
  func.func @transform_3(%arg0: i32) -> (i32, i32) {
    %c0_i32 = arith.constant 0 : i32
    %c0_i32_0 = arith.constant 0 : i32
    %c0_i32_1 = arith.constant 0 : i32
    return %c0_i32, %c0_i32_0 : i32, i32
  }
  func.func @transform_4(%arg0: i32) -> (i32, i32) {
    %c0_i32 = arith.constant 0 : i32
    %c0_i32_0 = arith.constant 0 : i32
    return %c0_i32, %arg0 : i32, i32
  }
}

</mosaic_0001>

<llo_original>
// kernel: tpu_custom_call.1
$region0: #{tpu_custom_call.1}
  #allocation0 [shape = 'u32[]', space=smem, size = 0x4, offset = 0x4, fixed_abs, tag = 'smem constant byte address 0x4 - core index']
  #allocation1 [shape = 'u32[144,128]{1,0:T(1,128)}', space=vmem, size = 0x12000, scoped, tag = 'internal scratch']
  %s0 = inlined_call_operand.vmem [shape: bf16[16,128], index: 0, kind: input, shape index: {}]
  %s1 = inlined_call_operand.vmem [shape: bf16[32,16], index: 1, kind: input, shape index: {}]
  %s2 = inlined_call_operand.vmem [shape: f32[32,1], index: 2, kind: input, shape index: {}]
  %s3 = inlined_call_operand.vmem [shape: f32[32,1], index: 3, kind: input, shape index: {}]
  %s4 = inlined_call_operand.hbm [shape: f32[1,128], index: 4, kind: output, shape index: {}]
  %s5 = sld [smem:[#allocation0]]
  $region26: #{tpu_custom_call.1} parent=0
    _
  %s7 = ssub.s32 1, %s5
  %s8 = scalar_select 0, %s7, %s5
  $region1: #{tpu_custom_call.1} parent=0
    #allocation2 [shape = 'u8[512]{0}', space=vmem, size = 0x400, scoped, tag = 'output window, operand 0, single buffered']
    #allocation3 [shape = 's32[1]{0}', space=sflag, size = 0x4, scoped, tag = 'scoped memory for tpu_custom_call.1']
    %9 = vsyncpa [#allocation3], 0
    // Predicated region
    $region2: #{tpu_custom_call.1} parent=1 // pred_check
      _
    $region3: #{tpu_custom_call.1} parent=1 // pred_check_branch
      %11 = sbr.rel (0) target = $region5
    $region4: #{tpu_custom_call.1} parent=1 // pred_region
      _
    $region5: #{tpu_custom_call.1} parent=1 // pred_fallthru
      _
    // Predicated region
    $region6: #{tpu_custom_call.1} parent=1 // pred_check
      _
    $region7: #{tpu_custom_call.1} parent=1 // pred_check_branch
      %13 = sbr.rel (0) target = $region9
    $region8: #{tpu_custom_call.1} parent=1 // pred_region
      _
    $region9: #{tpu_custom_call.1} parent=1 // pred_fallthru
      _
    // Predicated region
    $region10: #{tpu_custom_call.1} parent=1 // pred_check
      _
    $region11: #{tpu_custom_call.1} parent=1 // pred_check_branch
      %15 = sbr.rel (0) target = $region13
    $region12: #{tpu_custom_call.1} parent=1 // pred_region
      _
    $region13: #{tpu_custom_call.1} parent=1 // pred_fallthru
      _
    // Predicated region
    $region14: #{tpu_custom_call.1} parent=1 // pred_check
      _
    $region15: #{tpu_custom_call.1} parent=1 // pred_check_branch
      %17 = sbr.rel (0) target = $region17
    $region16: #{tpu_custom_call.1} parent=1 // pred_region
      _
    $region17: #{tpu_custom_call.1} parent=1 // pred_fallthru
      _
    %v19 = vld [vmem:[%s1] sm:$0xf]
    %v20 = vld [vmem:[%s1 + $0x4] sm:$0xf]
    %v21 = vld [vmem:[%s1 + $0x8] sm:$0xf]
    %v22 = vld [vmem:[%s1 + $0xc] sm:$0xf]
    %v23 = vld [vmem:[%s0] sm:$0xf]
    %v24 = vld [vmem:[%s0 + $0x4] sm:$0xf]
    %v25 = vld [vmem:[%s2] sm:$0xff]
    %v26 = vld [vmem:[%s2 + $0x8] sm:$0xff]
    %v27 = vld [vmem:[%s2 + $0x10] sm:$0xff]
    %v28 = vld [vmem:[%s2 + $0x18] sm:$0xff]
    %30 = vset.pattern.permute.xlu0 0
    %31 = vperm.xlu0 %30, %v25
    %v32 = vpop.permute.xlu0 %31
    %35 = vset.pattern.permute.xlu0 0
    %36 = vperm.xlu0 %35, %v26
    %v37 = vpop.permute.xlu0 %36
    %40 = vset.pattern.permute.xlu0 0
    %41 = vperm.xlu0 %40, %v27
    %v42 = vpop.permute.xlu0 %41
    %45 = vset.pattern.permute.xlu0 0
    %46 = vperm.xlu0 %45, %v28
    %v47 = vpop.permute.xlu0 %46
    %v53 = vunpack.c.l.b16 %v19
    %v54 = vunpack.c.l.b16 %v20
    %v55 = vunpack.c.l.b16 %v21
    %v56 = vunpack.c.l.b16 %v22
    %v57 = vpack.c.b16 %v54, %v53
    %v58 = vpack.c.b16 %v56, %v55
    %v61 = vunpack.c.l.b16 %v23
    %v62 = vunpack.c.l.b16 %v24
    %v63 = vpack.c.b16 %v62, %v61
    %vm65 = vcmask 130048
    %v67 = vsel %vm65, %v57, 0
    %v70 = vsel %vm65, %v58, 0
    %72 = vmatprep.subr.bf16.mxu0 0
    %73 = vmatpush1.bf16.msra.mxu0 0
    %74 = vmatprep.subr.bf16.mxu0 0
    %75 = vmatpush1.bf16.msra.mxu0 0
    %76 = vmatprep.subr.bf16.mxu0 0
    %77 = vmatpush1.bf16.msra.mxu0 0
    %78 = vmatprep.subr.bf16.mxu0 0
    %79 = vmatpush1.bf16.msra.mxu0 0
    %80 = vmatprep.subr.bf16.mxu0 0
    %81 = vmatpush1.bf16.msra.mxu0 0
    %82 = vmatprep.subr.bf16.mxu0 0
    %83 = vmatpush1.bf16.msra.mxu0 0
    %84 = vmatprep.subr.bf16.mxu0 0
    %85 = vmatpush1.bf16.msra.mxu0 0
    %86 = vmatprep.subr.bf16.mxu0 0
    %87 = vmatpush1.bf16.msra.mxu0 %v63
    %88 = vmatprep.subr.bf16.mxu0 0
    %89 = vmatpush2.bf16.msra.mxu0 0
    %90 = vmatprep.subr.bf16.mxu0 0
    %91 = vmatpush2.bf16.msra.mxu0 0
    %92 = vmatprep.subr.bf16.mxu0 0
    %93 = vmatpush2.bf16.msra.mxu0 0
    %94 = vmatprep.subr.bf16.mxu0 0
    %95 = vmatpush2.bf16.msra.mxu0 0
    %96 = vmatprep.subr.bf16.mxu0 0
    %97 = vmatpush2.bf16.msra.mxu0 0
    %98 = vmatprep.subr.bf16.mxu0 0
    %99 = vmatpush2.bf16.msra.mxu0 0
    %100 = vmatprep.subr.bf16.mxu0 0
    %101 = vmatpush2.bf16.msra.mxu0 0
    %102 = vmatprep.subr.bf16.mxu0 0
    %103 = vmatpush2.bf16.msra.mxu0 0
    %104 = vmatprep.mubr.bf16.mxu0 0
    %105 = vmatmul.mubr.bf16.gmra.mxu0 %v67
    %v106 = vpop.f32.mrf.mxu0
    %v107 = vadd.f32 %v32, %v106
    %v108 = vpop.f32.mrf.mxu0
    %v109 = vpop.f32.mrf.mxu0
    %v110 = vadd.f32 %v37, %v109
    %v111 = vpop.f32.mrf.mxu0
    %112 = vmatprep.mubr.bf16.mxu0 0
    %113 = vmatmul.mubr.bf16.gmra.mxu0 %v70
    %v114 = vpop.f32.mrf.mxu0
    %v115 = vadd.f32 %v42, %v114
    %v116 = vpop.f32.mrf.mxu0
    %v117 = vpop.f32.mrf.mxu0
    %v118 = vadd.f32 %v47, %v117
    %v119 = vpop.f32.mrf.mxu0
    %120 = vdwg.mxu0
    %v121 = vmax.f32 %v107, 0.0
    %v122 = vmax.f32 %v110, 0.0
    %v123 = vmax.f32 %v115, 0.0
    %v124 = vmax.f32 %v118, 0.0
    %v125 = vld [vmem:[%s3] sm:$0xff]
    %v126 = vld [vmem:[%s3 + $0x8] sm:$0xff]
    %v127 = vld [vmem:[%s3 + $0x10] sm:$0xff]
    %v128 = vld [vmem:[%s3 + $0x18] sm:$0xff]
    %130 = vset.pattern.permute.xlu0 0
    %131 = vperm.xlu0 %130, %v125
    %v132 = vpop.permute.xlu0 %131
    %135 = vset.pattern.permute.xlu0 0
    %136 = vperm.xlu0 %135, %v126
    %v137 = vpop.permute.xlu0 %136
    %140 = vset.pattern.permute.xlu0 0
    %141 = vperm.xlu0 %140, %v127
    %v142 = vpop.permute.xlu0 %141
    %145 = vset.pattern.permute.xlu0 0
    %146 = vperm.xlu0 %145, %v128
    %v147 = vpop.permute.xlu0 %146
    %v149 = vmul.f32 %v121, %v132
    %v150 = vmul.f32 %v122, %v137
    %v151 = vmul.f32 %v123, %v142
    %v152 = vmul.f32 %v124, %v147
    %v153 = vadd.f32 %v149, %v150
    %v154 = vadd.f32 %v153, %v151
    %v155 = vadd.f32 %v154, %v152
    %v156 = vrot.slane %v155, 4
    %v157 = vadd.f32 %v155, %v156
    %v158 = vrot.slane %v157, 2
    %v159 = vadd.f32 %v157, %v158
    %v160 = vrot.slane %v159, 1
    %v161 = vadd.f32 %v159, %v160
    %162 = vst [vmem:[#allocation2] sm:$0x1] %v161
    // Predicated region
    $region18: #{tpu_custom_call.1} parent=1 // pred_check
      _
    $region19: #{tpu_custom_call.1} parent=1 // pred_check_branch
      %164 = sbr.rel (0) target = $region21
    $region20: #{tpu_custom_call.1} parent=1 // pred_region
      %s166 = ssub.s32 16, 16
      %167 = vsyncadd [#allocation3], %s166
      %s169 = sshll.u32 [#allocation2], 4
      %s170 = int_to_ptr.vmem [resolvable:$true] %s169
      %172 = dma.vmem_to_hbm [thread:$0]  %s170, 16, %s4, [#allocation3]
    $region21: #{tpu_custom_call.1} parent=1 // pred_fallthru
      _
    // Predicated region
    $region22: #{tpu_custom_call.1} parent=1 // pred_check
      _
    $region23: #{tpu_custom_call.1} parent=1 // pred_check_branch
      %174 = sbr.rel (0) target = $region25
    $region24: #{tpu_custom_call.1} parent=1 // pred_region
      %175 = dma.done [#allocation3], 16
    $region25: #{tpu_custom_call.1} parent=1 // pred_fallthru
      _
    %176 = vsyncpa [#allocation3], 1

</llo_original>
